<compile_context>
chip_gen: v5e
topology: v5e:2x2
jax: 0.10.0
libtpu: 0.0.40
codegen_flags: <defaults>
</compile_context>

<pallas_src>
import functools
import math

import jax
import jax.numpy as jnp
from jax.experimental import pallas as pl
from jax.experimental.pallas import tpu as pltpu

_TWO_PI = 2.0 * math.pi
_MAX_TILE_B = 16384    # lanes (batch rows) per tile: ~2.1 MB f32 output / step
_SINGLE_TILE_B = 1024  # below this, one grid step; op is overhead-dominated anyway


def _round_up(x: int, m: int) -> int:
    return ((x + m - 1) // m) * m


def _sinusoidal_kernel(t_ref, w_ref, o_ref, *, half_dim: int):
    # Feature-major layout: t_ref (1, TB), w_ref (H, 1), o_ref (1 + 2H, TB).
    t = t_ref[...]                          # (1, TB) f32
    w = w_ref[...]                          # (H, 1)  f32
    # Reassociated: scale the tiny (H,1) weights once, then a single full-size
    # (H, TB) broadcast multiply on the VPU (never the MXU).
    freqs = t * (w * _TWO_PI)               # (H, TB)
    # Sublane-sliced, full-lane stores (no lane masking, no concatenate, no
    # extra VMEM temp).
    # NOTE: on a ragged final batch tile the padded lanes hold garbage values;
    # that is harmless because the output writeback is clipped to the true B —
    # do not add any reduction over the lane (batch) axis here.
    o_ref[0:1, :] = t.astype(o_ref.dtype)
    o_ref[1:1 + half_dim, :] = jnp.sin(freqs).astype(o_ref.dtype)
    o_ref[1 + half_dim:1 + 2 * half_dim, :] = jnp.cos(freqs).astype(o_ref.dtype)


def random_or_learned_sinusoidal_pos_emb(t, weights, *, out_dtype=jnp.float32,
                                         batch_major_output=True):
    """t: (B,), weights: (half_dim,) -> (B, 1 + 2*half_dim) (torch semantics).

    If batch_major_output=False, returns the feature-major (1 + 2*half_dim, B)
    slab directly — avoids the wrapper-side transpose, which is pure layout
    plumbing a downstream consumer can absorb.
    """
    B = t.shape[0]
    H = weights.shape[0]
    out_dim = 1 + 2 * H

    t2d = t.reshape(1, B).astype(jnp.float32)         # batch on the lane axis
    w2d = weights.reshape(H, 1).astype(jnp.float32)   # features on sublanes

    if B <= _SINGLE_TILE_B:
        # One grid step; block dims equal to the full array dims are always legal.
        tile_b = B
    else:
        # Multiple-of-128 lane tiles.  Cap at ceil(B/2) so the parallel grid
        # axis has >= 2 steps (lets v7x shard across both TensorCores), and at
        # _MAX_TILE_B so each step still writes ~2 MB (amortizing the ~0.35 us
        # per-step pipeline overhead) while staying tiny in VMEM even
        # double-buffered (well under the 16 MiB v5e scoped default).
        tile_b = min(_MAX_TILE_B, _round_up(pl.cdiv(B, 2), 128))
    grid = (pl.cdiv(B, tile_b),)

    kernel = functools.partial(_sinusoidal_kernel, half_dim=H)

    out_t = pl.pallas_call(
        kernel,
        out_shape=jax.ShapeDtypeStruct((out_dim, B), out_dtype),
        grid=grid,
        in_specs=[
            pl.BlockSpec((1, tile_b), lambda i: (0, i)),
            pl.BlockSpec((H, 1), lambda i: (0, 0)),
        ],
        out_specs=pl.BlockSpec((out_dim, tile_b), lambda i: (0, i)),
        compiler_params=pltpu.CompilerParams(
            dimension_semantics=("parallel",),
        ),
    )(t2d, w2d)

    if batch_major_output:
        return out_t.T    # layout plumbing only; matches torch (B, out_dim)
    return out_t


def _reference(t, weights):
    # Mirrors the PyTorch forward exactly: t * w * 2 * pi, concat([t, sin, cos]).
    t = t[:, None]
    freqs = t * weights[None, :] * 2.0 * math.pi
    return jnp.concatenate([t, jnp.sin(freqs), jnp.cos(freqs)], axis=-1)


if __name__ == "__main__":
    latent_dim = 32          # must be even; half_dim = 16
    half_dim = latent_dim // 2
    batch = 8

    key = jax.random.PRNGKey(0)
    k_t, k_w, k_t2 = jax.random.split(key, 3)

    # Deterministic parameter init (stand-in for torch.randn(half_dim)).
    weights = jax.random.normal(k_w, (half_dim,), dtype=jnp.float32)
    # Example timesteps (moderate magnitude: sin/cos of huge arguments amplifies
    # benign ULP-level reassociation differences vs the reference).
    t = jax.random.uniform(k_t, (batch,), dtype=jnp.float32) * 10.0

    out = random_or_learned_sinusoidal_pos_emb(t, weights)
    out = jax.block_until_ready(out)

    ref = _reference(t, weights)
    assert out.shape == (batch, 1 + latent_dim), out.shape
    assert jnp.allclose(out, ref, atol=1e-4, rtol=1e-4), "mismatch vs reference"

    # Exercise the tiled large-B path (multi-step grid + ragged final tile).
    big_batch = 2500
    t_big = jax.random.uniform(k_t2, (big_batch,), dtype=jnp.float32)
    out_big = jax.block_until_ready(
        random_or_learned_sinusoidal_pos_emb(t_big, weights))
    ref_big = _reference(t_big, weights)
    assert out_big.shape == (big_batch, 1 + latent_dim), out_big.shape
    assert jnp.allclose(out_big, ref_big, atol=1e-4, rtol=1e-4), "mismatch (big)"

    print("KERNEL_OK")
</pallas_src>

<mosaic_0001>
module attributes {stable_mosaic.version = 11 : i64} {
  func.func @_sinusoidal_kernel(%arg0: i32, %arg1: memref<1x8xf32, #tpu.memory_space<vmem>>, %arg2: memref<16x1xf32, #tpu.memory_space<vmem>>, %arg3: memref<33x8xf32, #tpu.memory_space<vmem>>) attributes {dimension_semantics = [#tpu.dimension_semantics<parallel>], iteration_bounds = array<i64: 1>, scalar_prefetch = 0 : i64, scratch_operands = 0 : i64, tpu.core_type = #tpu.core_type<tc>, window_params = [{transform_indices = @transform_0, window_bounds = array<i64: 1, 8>}, {pipeline_mode = #tpu.pipeline_mode<synchronous>, transform_indices = @transform_1, window_bounds = array<i64: 16, 1>}, {transform_indices = @transform_2, window_bounds = array<i64: 33, 8>}]} {
    %c0 = arith.constant 0 : index
    %c0_0 = arith.constant 0 : index
    %0 = vector.load %arg1[%c0, %c0_0] : memref<1x8xf32, #tpu.memory_space<vmem>>, vector<1x8xf32>
    %c0_1 = arith.constant 0 : index
    %c0_2 = arith.constant 0 : index
    %1 = vector.load %arg2[%c0_1, %c0_2] : memref<16x1xf32, #tpu.memory_space<vmem>>, vector<16x1xf32>
    %cst = arith.constant 6.28318548 : f32
    %2 = vector.broadcast %cst : f32 to vector<16x1xf32>
    %3 = arith.mulf %1, %2 : vector<16x1xf32>
    %4 = vector.broadcast %0 : vector<1x8xf32> to vector<16x8xf32>
    %5 = vector.broadcast %3 : vector<16x1xf32> to vector<16x8xf32>
    %6 = arith.mulf %4, %5 : vector<16x8xf32>
    %c0_3 = arith.constant 0 : index
    %c0_4 = arith.constant 0 : index
    %7 = vector.load %arg3[%c0_3, %c0_4] : memref<33x8xf32, #tpu.memory_space<vmem>>, vector<1x8xf32>
    tpu.vector_store %arg3[%c0_3, %c0_4], %0 {strides = array<i32>} : memref<33x8xf32, #tpu.memory_space<vmem>>, vector<1x8xf32>,
    %8 = math.sin %6 : vector<16x8xf32>
    %c1 = arith.constant 1 : index
    %c0_5 = arith.constant 0 : index
    %9 = vector.load %arg3[%c1, %c0_5] : memref<33x8xf32, #tpu.memory_space<vmem>>, vector<16x8xf32>
    tpu.vector_store %arg3[%c1, %c0_5], %8 {strides = array<i32>} : memref<33x8xf32, #tpu.memory_space<vmem>>, vector<16x8xf32>,
    %10 = math.cos %6 : vector<16x8xf32>
    %c17 = arith.constant 17 : index
    %c0_6 = arith.constant 0 : index
    %11 = vector.load %arg3[%c17, %c0_6] : memref<33x8xf32, #tpu.memory_space<vmem>>, vector<16x8xf32>
    tpu.vector_store %arg3[%c17, %c0_6], %10 {strides = array<i32>} : memref<33x8xf32, #tpu.memory_space<vmem>>, vector<16x8xf32>,
    return
  }
  func.func @transform_0(%arg0: i32) -> (i32, i32) {
    %c0_i32 = arith.constant 0 : i32
    %c0_i32_0 = arith.constant 0 : i32
    return %c0_i32, %arg0 : i32, i32
  }
  func.func @transform_1(%arg0: i32) -> (i32, i32) {
    %c0_i32 = arith.constant 0 : i32
    %c0_i32_0 = arith.constant 0 : i32
    %c0_i32_1 = arith.constant 0 : i32
    return %c0_i32, %c0_i32_0 : i32, i32
  }
  func.func @transform_2(%arg0: i32) -> (i32, i32) {
    %c0_i32 = arith.constant 0 : i32
    %c0_i32_0 = arith.constant 0 : i32
    return %c0_i32, %arg0 : i32, i32
  }
}

</mosaic_0001>

<llo_original>
// kernel: tpu_custom_call.1
$region0: #{tpu_custom_call.1}
  #allocation0 [shape = 'u32[]', space=smem, size = 0x4, offset = 0x4, fixed_abs, tag = 'smem constant byte address 0x4 - core index']
  #allocation1 [shape = 'u32[72,128]{1,0:T(1,128)}', space=vmem, size = 0x9000, scoped, tag = 'internal scratch']
  %s0 = inlined_call_operand.vmem [shape: f32[1,8], index: 0, kind: input, shape index: {}]
  %s1 = inlined_call_operand.vmem [shape: f32[16,1], index: 1, kind: input, shape index: {}]
  %s2 = inlined_call_operand.vmem [shape: f32[33,8], index: 2, kind: output, shape index: {}]
  %s3 = sld [smem:[#allocation0]]
  $region18: #{tpu_custom_call.1} parent=0
    _
  %s5 = ssub.s32 1, %s3
  %s6 = scalar_select 0, %s5, %s3
  // Predicated region
  $region2: #{tpu_custom_call.1} parent=0 // pred_check
    _
  $region3: #{tpu_custom_call.1} parent=0 // pred_check_branch
    %8 = sbr.rel (0) target = $region5
  $region4: #{tpu_custom_call.1} parent=0 // pred_region
    _
  $region5: #{tpu_custom_call.1} parent=0 // pred_fallthru
    _
  // Predicated region
  $region6: #{tpu_custom_call.1} parent=0 // pred_check
    _
  $region7: #{tpu_custom_call.1} parent=0 // pred_check_branch
    %10 = sbr.rel (0) target = $region9
  $region8: #{tpu_custom_call.1} parent=0 // pred_region
    _
  $region9: #{tpu_custom_call.1} parent=0 // pred_fallthru
    _
  %v11 = vld [vmem:[%s0] sm:$0x1]
  %v12 = vld [vmem:[%s1] sm:$0xff]
  %v13 = vld [vmem:[%s1 + $0x8] sm:$0xff]
  %v14 = vmul.f32 %v12, 6.2831855
  %v15 = vmul.f32 %v13, 6.2831855
  %v17 = vperm.slane %v11, 0
  %20 = vset.pattern.permute.xlu0 0
  %21 = vperm.xlu0 %20, %v14
  %v22 = vpop.permute.xlu0 %21
  %25 = vset.pattern.permute.xlu0 0
  %26 = vperm.xlu0 %25, %v15
  %v27 = vpop.permute.xlu0 %26
  %v29 = vmul.f32 %v17, %v22
  %v30 = vmul.f32 %v17, %v27
  %vm31 = vcmask 57344
  %32 = vst.msk [vmem:[%s2] sm:$0x1] %vm31, %v11
  %v33 = vand.u32 2147483647, %v29
  %vm34 = vcmp.le.f32.partialorder %v33, 0.7853982
  %vm35 = vcmp.lt.s32.totalorder %v29, 0
  %v36 = vand.u32 %v29, 2139095040
  %v37 = vshrl.u32 %v36, 23
  %v38 = vsub.s32 %v37, 127
  %v39 = vand.u32 2147483647, %v29
  %v40 = vand.u32 %v39, 8388607
  %v41 = vor.u32 %v40, 8388608
  %v42 = vsub.s32 0, %v41
  %v43 = vadd.s32 %v38, 1
  %vm44 = vcmp.gt.s32.totalorder %v43, 0
  %v45 = vsel %vm44, %v43, 0
  %v46 = vshrl.u32 %v45, 5
  %v47 = vand.u32 %v45, 31
  %v48 = vsub.s32 32, %v47
  %v49 = vshrl.u32 683565275, %v48
  %v50 = vshll.u32 683565275, %v47
  %v51 = vshrl.u32 2475754826, %v48
  %v52 = vor.u32 %v50, %v51
  %v53 = vshll.u32 2475754826, %v47
  %v54 = vshrl.u32 2131351028, %v48
  %v55 = vor.u32 %v53, %v54
  %v56 = vshll.u32 2131351028, %v47
  %v57 = vshrl.u32 2102212464, %v48
  %v58 = vor.u32 %v56, %v57
  %v59 = vshll.u32 2102212464, %v47
  %v60 = vshrl.u32 920167782, %v48
  %v61 = vor.u32 %v59, %v60
  %v62 = vshll.u32 920167782, %v47
  %v63 = vshrl.u32 1326507024, %v48
  %v64 = vor.u32 %v62, %v63
  %vm65 = vcmp.lt.s32.totalorder %v46, 1
  %vm66 = vcmp.lt.s32.totalorder %v46, 2
  %vm67 = vcmp.lt.s32.totalorder %v46, 3
  %vm68 = vcmp.lt.s32.totalorder %v46, 4
  %v69 = vsel %vm65, %v49, %v52
  %v70 = vsel %vm68, %v58, 2102212464
  %v71 = vsel %vm67, %v55, %v70
  %v72 = vsel %vm66, %v69, %v71
  %v73 = vsel %vm65, %v52, %v55
  %v74 = vsel %vm68, %v61, 920167782
  %v75 = vsel %vm67, %v58, %v74
  %v76 = vsel %vm66, %v73, %v75
  %v77 = vsel %vm65, %v55, %v58
  %v78 = vsel %vm68, %v64, 1326507024
  %v79 = vsel %vm67, %v61, %v78
  %v80 = vsel %vm66, %v77, %v79
  %v81 = vshll.u32 %v41, 8
  %v82 = vand.u32 %v81, 65535
  %v83 = vshrl.u32 %v81, 16
  %v84 = vand.u32 %v80, 65535
  %v85 = vshrl.u32 %v80, 16
  %v86 = vmul.u32 %v82, %v84
  %v87 = vmul.u32 %v82, %v85
  %v88 = vmul.u32 %v83, %v84
  %v89 = vmul.u32 %v83, %v85
  %v90 = vshll.u32 %v87, 16
  %v91 = vshrl.u32 %v87, 16
  %v92 = vshll.u32 %v88, 16
  %v93 = vshrl.u32 %v88, 16
  %vm94 = vc.u32 %v86, %v90
  %v95 = vsel %vm94, 1, 0
  %v96 = vadd.s32 %v86, %v90
  %v97 = vadd.s32 %v89, %v95
  %vm98 = vc.u32 %v96, %v92
  %v99 = vsel %vm98, 1, 0
  %v100 = vadd.s32 %v96, %v92
  %v101 = vadd.s32 %v97, %v99
  %v102 = vadd.s32 %v101, %v91
  %v103 = vadd.s32 %v102, %v93
  %v104 = vand.u32 %v81, 65535
  %v105 = vshrl.u32 %v81, 16
  %v106 = vand.u32 %v76, 65535
  %v107 = vshrl.u32 %v76, 16
  %v108 = vmul.u32 %v104, %v106
  %v109 = vmul.u32 %v104, %v107
  %v110 = vmul.u32 %v105, %v106
  %v111 = vmul.u32 %v105, %v107
  %v112 = vshll.u32 %v109, 16
  %v113 = vshrl.u32 %v109, 16
  %v114 = vshll.u32 %v110, 16
  %v115 = vshrl.u32 %v110, 16
  %vm116 = vc.u32 %v108, %v112
  %v117 = vsel %vm116, 1, 0
  %v118 = vadd.s32 %v108, %v112
  %v119 = vadd.s32 %v111, %v117
  %vm120 = vc.u32 %v118, %v114
  %v121 = vsel %vm120, 1, 0
  %v122 = vadd.s32 %v118, %v114
  %v123 = vadd.s32 %v119, %v121
  %v124 = vadd.s32 %v123, %v113
  %v125 = vadd.s32 %v124, %v115
  %v126 = vmul.u32 %v81, %v72
  %v127 = vadd.s32 %v103, %v122
  %vm128 = vc.u32 %v103, %v122
  %v129 = vadd.s32 %v125, 1
  %v130 = vsel %vm128, %v129, %v125
  %v131 = vadd.s32 %v126, %v130
  %v132 = vadd.s32 %v131, 536870912
  %v133 = vshrl.u32 %v132, 30
  %v134 = vshll.u32 %v133, 30
  %v135 = vsub.s32 %v131, %v134
  %vm136 = vcmp.lt.s32.totalorder %v135, 0
  %v137 = vsub.s32 0, %v135
  %v138 = vsel %vm136, %v137, %v135
  %v139 = vclz %v138
  %v140 = vsub.s32 %v139, 2
  %vm141 = vcmp.gt.s32.totalorder 0, %v140
  %v142 = vsel %vm141, 0, %v140
  %v143 = vsub.s32 32, %v142
  %v144 = vshll.u32 %v135, %v142
  %v145 = vshrl.u32 %v127, %v143
  %v146 = vor.u32 %v144, %v145
  %v147 = vsub.s32 4294967266, %v142
  %v148 = vadd.s32 %v147, 127
  %v149 = vshll.u32 %v148, 23
  %v150 = vor.u32 4788187, %v149
  %v151 = vand.u32 2147483647, %v150
  %v153 = vcvt.s32.f32 %v146
  %v154 = vmul.f32 %v153, %v151
  %v155 = vxor.u32 %v154, 2147483648
  %v156 = vsel %vm35, %v155, %v154
  %v157 = vsub.s32 4, %v133
  %v158 = vsel %vm35, %v157, %v133
  %v159 = vsel %vm34, %v29, %v156
  %v160 = vsel %vm34, 0, %v158
  %v161 = vmul.f32 %v159, %v159
  %v162 = vmul.f32 %v161, -0.001358992
  %v163 = vadd.f32 %v162, 0.041655596
  %v164 = vmul.f32 %v161, %v163
  %v165 = vadd.f32 %v164, -0.4999988
  %v166 = vmul.f32 %v161, %v165
  %v167 = vadd.f32 1.0, %v166
  %v168 = vmul.f32 %v159, %v159
  %v169 = vmul.f32 %v168, -0.00019511016
  %v170 = vadd.f32 %v169, 0.008332121
  %v171 = vmul.f32 %v168, %v170
  %v172 = vadd.f32 %v171, -0.16666654
  %v173 = vmul.f32 %v168, %v172
  %v174 = vadd.f32 %v173, 1.0
  %v175 = vmul.f32 %v174, %v159
  %vm176 = vweird.f32 %v29
  %v177 = vadd.s32 %v160, 3
  %v178 = vand.u32 %v177, 3
  %vm179 = vcmp.lt.s32.totalorder %v178, 2
  %vm180 = vcmp.eq.s32.totalorder %v178, 0
  %v181 = vxor.u32 %v175, 2147483648
  %v182 = vsel %vm180, %v167, %v181
  %vm183 = vcmp.eq.s32.totalorder %v178, 2
  %v184 = vxor.u32 %v167, 2147483648
  %v185 = vsel %vm183, %v184, %v175
  %v186 = vsel %vm179, %v182, %v185
  %v187 = vsel %vm176, nan, %v186
  %v188 = vand.u32 2147483647, %v30
  %vm189 = vcmp.le.f32.partialorder %v188, 0.7853982
  %vm190 = vcmp.lt.s32.totalorder %v30, 0
  %v191 = vand.u32 %v30, 2139095040
  %v192 = vshrl.u32 %v191, 23
  %v193 = vsub.s32 %v192, 127
  %v194 = vand.u32 2147483647, %v30
  %v195 = vand.u32 %v194, 8388607
  %v196 = vor.u32 %v195, 8388608
  %v197 = vsub.s32 0, %v196
  %v198 = vadd.s32 %v193, 1
  %vm199 = vcmp.gt.s32.totalorder %v198, 0
  %v200 = vsel %vm199, %v198, 0
  %v201 = vshrl.u32 %v200, 5
  %v202 = vand.u32 %v200, 31
  %v203 = vsub.s32 32, %v202
  %v204 = vshrl.u32 683565275, %v203
  %v205 = vshll.u32 683565275, %v202
  %v206 = vshrl.u32 2475754826, %v203
  %v207 = vor.u32 %v205, %v206
  %v208 = vshll.u32 2475754826, %v202
  %v209 = vshrl.u32 2131351028, %v203
  %v210 = vor.u32 %v208, %v209
  %v211 = vshll.u32 2131351028, %v202
  %v212 = vshrl.u32 2102212464, %v203
  %v213 = vor.u32 %v211, %v212
  %v214 = vshll.u32 2102212464, %v202
  %v215 = vshrl.u32 920167782, %v203
  %v216 = vor.u32 %v214, %v215
  %v217 = vshll.u32 920167782, %v202
  %v218 = vshrl.u32 1326507024, %v203
  %v219 = vor.u32 %v217, %v218
  %vm220 = vcmp.lt.s32.totalorder %v201, 1
  %vm221 = vcmp.lt.s32.totalorder %v201, 2
  %vm222 = vcmp.lt.s32.totalorder %v201, 3
  %vm223 = vcmp.lt.s32.totalorder %v201, 4
  %v224 = vsel %vm220, %v204, %v207
  %v225 = vsel %vm223, %v213, 2102212464
  %v226 = vsel %vm222, %v210, %v225
  %v227 = vsel %vm221, %v224, %v226
  %v228 = vsel %vm220, %v207, %v210
  %v229 = vsel %vm223, %v216, 920167782
  %v230 = vsel %vm222, %v213, %v229
  %v231 = vsel %vm221, %v228, %v230
  %v232 = vsel %vm220, %v210, %v213
  %v233 = vsel %vm223, %v219, 1326507024
  %v234 = vsel %vm222, %v216, %v233
  %v235 = vsel %vm221, %v232, %v234
  %v236 = vshll.u32 %v196, 8
  %v237 = vand.u32 %v236, 65535
  %v238 = vshrl.u32 %v236, 16
  %v239 = vand.u32 %v235, 65535
  %v240 = vshrl.u32 %v235, 16
  %v241 = vmul.u32 %v237, %v239
  %v242 = vmul.u32 %v237, %v240
  %v243 = vmul.u32 %v238, %v239
  %v244 = vmul.u32 %v238, %v240
  %v245 = vshll.u32 %v242, 16
  %v246 = vshrl.u32 %v242, 16
  %v247 = vshll.u32 %v243, 16
  %v248 = vshrl.u32 %v243, 16
  %vm249 = vc.u32 %v241, %v245
  %v250 = vsel %vm249, 1, 0
  %v251 = vadd.s32 %v241, %v245
  %v252 = vadd.s32 %v244, %v250
  %vm253 = vc.u32 %v251, %v247
  %v254 = vsel %vm253, 1, 0
  %v255 = vadd.s32 %v251, %v247
  %v256 = vadd.s32 %v252, %v254
  %v257 = vadd.s32 %v256, %v246
  %v258 = vadd.s32 %v257, %v248
  %v259 = vand.u32 %v236, 65535
  %v260 = vshrl.u32 %v236, 16
  %v261 = vand.u32 %v231, 65535
  %v262 = vshrl.u32 %v231, 16
  %v263 = vmul.u32 %v259, %v261
  %v264 = vmul.u32 %v259, %v262
  %v265 = vmul.u32 %v260, %v261
  %v266 = vmul.u32 %v260, %v262
  %v267 = vshll.u32 %v264, 16
  %v268 = vshrl.u32 %v264, 16
  %v269 = vshll.u32 %v265, 16
  %v270 = vshrl.u32 %v265, 16
  %vm271 = vc.u32 %v263, %v267
  %v272 = vsel %vm271, 1, 0
  %v273 = vadd.s32 %v263, %v267
  %v274 = vadd.s32 %v266, %v272
  %vm275 = vc.u32 %v273, %v269
  %v276 = vsel %vm275, 1, 0
  %v277 = vadd.s32 %v273, %v269
  %v278 = vadd.s32 %v274, %v276
  %v279 = vadd.s32 %v278, %v268
  %v280 = vadd.s32 %v279, %v270
  %v281 = vmul.u32 %v236, %v227
  %v282 = vadd.s32 %v258, %v277
  %vm283 = vc.u32 %v258, %v277
  %v284 = vadd.s32 %v280, 1
  %v285 = vsel %vm283, %v284, %v280
  %v286 = vadd.s32 %v281, %v285
  %v287 = vadd.s32 %v286, 536870912
  %v288 = vshrl.u32 %v287, 30
  %v289 = vshll.u32 %v288, 30
  %v290 = vsub.s32 %v286, %v289
  %vm291 = vcmp.lt.s32.totalorder %v290, 0
  %v292 = vsub.s32 0, %v290
  %v293 = vsel %vm291, %v292, %v290
  %v294 = vclz %v293
  %v295 = vsub.s32 %v294, 2
  %vm296 = vcmp.gt.s32.totalorder 0, %v295
  %v297 = vsel %vm296, 0, %v295
  %v298 = vsub.s32 32, %v297
  %v299 = vshll.u32 %v290, %v297
  %v300 = vshrl.u32 %v282, %v298
  %v301 = vor.u32 %v299, %v300
  %v302 = vsub.s32 4294967266, %v297
  %v303 = vadd.s32 %v302, 127
  %v304 = vshll.u32 %v303, 23
  %v305 = vor.u32 4788187, %v304
  %v306 = vand.u32 2147483647, %v305
  %v308 = vcvt.s32.f32 %v301
  %v309 = vmul.f32 %v308, %v306
  %v310 = vxor.u32 %v309, 2147483648
  %v311 = vsel %vm190, %v310, %v309
  %v312 = vsub.s32 4, %v288
  %v313 = vsel %vm190, %v312, %v288
  %v314 = vsel %vm189, %v30, %v311
  %v315 = vsel %vm189, 0, %v313
  %v316 = vmul.f32 %v314, %v314
  %v317 = vmul.f32 %v316, -0.001358992
  %v318 = vadd.f32 %v317, 0.041655596
  %v319 = vmul.f32 %v316, %v318
  %v320 = vadd.f32 %v319, -0.4999988
  %v321 = vmul.f32 %v316, %v320
  %v322 = vadd.f32 1.0, %v321
  %v323 = vmul.f32 %v314, %v314
  %v324 = vmul.f32 %v323, -0.00019511016
  %v325 = vadd.f32 %v324, 0.008332121
  %v326 = vmul.f32 %v323, %v325
  %v327 = vadd.f32 %v326, -0.16666654
  %v328 = vmul.f32 %v323, %v327
  %v329 = vadd.f32 %v328, 1.0
  %v330 = vmul.f32 %v329, %v314
  %vm331 = vweird.f32 %v30
  %v332 = vadd.s32 %v315, 3
  %v333 = vand.u32 %v332, 3
  %vm334 = vcmp.lt.s32.totalorder %v333, 2
  %vm335 = vcmp.eq.s32.totalorder %v333, 0
  %v336 = vxor.u32 %v330, 2147483648
  %v337 = vsel %vm335, %v322, %v336
  %vm338 = vcmp.eq.s32.totalorder %v333, 2
  %v339 = vxor.u32 %v322, 2147483648
  %v340 = vsel %vm338, %v339, %v330
  %v341 = vsel %vm334, %v337, %v340
  %v342 = vsel %vm331, nan, %v341
  %vm343 = vcmask 64512
  %344 = vst.msk [vmem:[%s2 + $0x1] sm:$0xff] %vm343, %v187
  %345 = vst.msk [vmem:[%s2 + $0x9] sm:$0xff] %vm343, %v342
  %v346 = vand.u32 2147483647, %v29
  %vm347 = vcmp.le.f32.partialorder %v346, 0.7853982
  %vm348 = vcmp.lt.s32.totalorder %v29, 0
  %v349 = vand.u32 %v29, 2139095040
  %v350 = vshrl.u32 %v349, 23
  %v351 = vsub.s32 %v350, 127
  %v352 = vand.u32 2147483647, %v29
  %v353 = vand.u32 %v352, 8388607
  %v354 = vor.u32 %v353, 8388608
  %v355 = vsub.s32 0, %v354
  %v356 = vadd.s32 %v351, 1
  %vm357 = vcmp.gt.s32.totalorder %v356, 0
  %v358 = vsel %vm357, %v356, 0
  %v359 = vshrl.u32 %v358, 5
  %v360 = vand.u32 %v358, 31
  %v361 = vsub.s32 32, %v360
  %v362 = vshrl.u32 683565275, %v361
  %v363 = vshll.u32 683565275, %v360
  %v364 = vshrl.u32 2475754826, %v361
  %v365 = vor.u32 %v363, %v364
  %v366 = vshll.u32 2475754826, %v360
  %v367 = vshrl.u32 2131351028, %v361
  %v368 = vor.u32 %v366, %v367
  %v369 = vshll.u32 2131351028, %v360
  %v370 = vshrl.u32 2102212464, %v361
  %v371 = vor.u32 %v369, %v370
  %v372 = vshll.u32 2102212464, %v360
  %v373 = vshrl.u32 920167782, %v361
  %v374 = vor.u32 %v372, %v373
  %v375 = vshll.u32 920167782, %v360
  %v376 = vshrl.u32 1326507024, %v361
  %v377 = vor.u32 %v375, %v376
  %vm378 = vcmp.lt.s32.totalorder %v359, 1
  %vm379 = vcmp.lt.s32.totalorder %v359, 2
  %vm380 = vcmp.lt.s32.totalorder %v359, 3
  %vm381 = vcmp.lt.s32.totalorder %v359, 4
  %v382 = vsel %vm378, %v362, %v365
  %v383 = vsel %vm381, %v371, 2102212464
  %v384 = vsel %vm380, %v368, %v383
  %v385 = vsel %vm379, %v382, %v384
  %v386 = vsel %vm378, %v365, %v368
  %v387 = vsel %vm381, %v374, 920167782
  %v388 = vsel %vm380, %v371, %v387
  %v389 = vsel %vm379, %v386, %v388
  %v390 = vsel %vm378, %v368, %v371
  %v391 = vsel %vm381, %v377, 1326507024
  %v392 = vsel %vm380, %v374, %v391
  %v393 = vsel %vm379, %v390, %v392
  %v394 = vshll.u32 %v354, 8
  %v395 = vand.u32 %v394, 65535
  %v396 = vshrl.u32 %v394, 16
  %v397 = vand.u32 %v393, 65535
  %v398 = vshrl.u32 %v393, 16
  %v399 = vmul.u32 %v395, %v397
  %v400 = vmul.u32 %v395, %v398
  %v401 = vmul.u32 %v396, %v397
  %v402 = vmul.u32 %v396, %v398
  %v403 = vshll.u32 %v400, 16
  %v404 = vshrl.u32 %v400, 16
  %v405 = vshll.u32 %v401, 16
  %v406 = vshrl.u32 %v401, 16
  %vm407 = vc.u32 %v399, %v403
  %v408 = vsel %vm407, 1, 0
  %v409 = vadd.s32 %v399, %v403
  %v410 = vadd.s32 %v402, %v408
  %vm411 = vc.u32 %v409, %v405
  %v412 = vsel %vm411, 1, 0
  %v413 = vadd.s32 %v409, %v405
  %v414 = vadd.s32 %v410, %v412
  %v415 = vadd.s32 %v414, %v404
  %v416 = vadd.s32 %v415, %v406
  %v417 = vand.u32 %v394, 65535
  %v418 = vshrl.u32 %v394, 16
  %v419 = vand.u32 %v389, 65535
  %v420 = vshrl.u32 %v389, 16
  %v421 = vmul.u32 %v417, %v419
  %v422 = vmul.u32 %v417, %v420
  %v423 = vmul.u32 %v418, %v419
  %v424 = vmul.u32 %v418, %v420
  %v425 = vshll.u32 %v422, 16
  %v426 = vshrl.u32 %v422, 16
  %v427 = vshll.u32 %v423, 16
  %v428 = vshrl.u32 %v423, 16
  %vm429 = vc.u32 %v421, %v425
  %v430 = vsel %vm429, 1, 0
  %v431 = vadd.s32 %v421, %v425
  %v432 = vadd.s32 %v424, %v430
  %vm433 = vc.u32 %v431, %v427
  %v434 = vsel %vm433, 1, 0
  %v435 = vadd.s32 %v431, %v427
  %v436 = vadd.s32 %v432, %v434
  %v437 = vadd.s32 %v436, %v426
  %v438 = vadd.s32 %v437, %v428
  %v439 = vmul.u32 %v394, %v385
  %v440 = vadd.s32 %v416, %v435
  %vm441 = vc.u32 %v416, %v435
  %v442 = vadd.s32 %v438, 1
  %v443 = vsel %vm441, %v442, %v438
  %v444 = vadd.s32 %v439, %v443
  %v445 = vadd.s32 %v444, 536870912
  %v446 = vshrl.u32 %v445, 30
  %v447 = vshll.u32 %v446, 30
  %v448 = vsub.s32 %v444, %v447
  %vm449 = vcmp.lt.s32.totalorder %v448, 0
  %v450 = vsub.s32 0, %v448
  %v451 = vsel %vm449, %v450, %v448
  %v452 = vclz %v451
  %v453 = vsub.s32 %v452, 2
  %vm454 = vcmp.gt.s32.totalorder 0, %v453
  %v455 = vsel %vm454, 0, %v453
  %v456 = vsub.s32 32, %v455
  %v457 = vshll.u32 %v448, %v455
  %v458 = vshrl.u32 %v440, %v456
  %v459 = vor.u32 %v457, %v458
  %v460 = vsub.s32 4294967266, %v455
  %v461 = vadd.s32 %v460, 127
  %v462 = vshll.u32 %v461, 23
  %v463 = vor.u32 4788187, %v462
  %v464 = vand.u32 2147483647, %v463
  %v466 = vcvt.s32.f32 %v459
  %v467 = vmul.f32 %v466, %v464
  %v468 = vxor.u32 %v467, 2147483648
  %v469 = vsel %vm348, %v468, %v467
  %v470 = vsub.s32 4, %v446
  %v471 = vsel %vm348, %v470, %v446
  %v472 = vsel %vm347, %v29, %v469
  %v473 = vsel %vm347, 0, %v471
  %v474 = vmul.f32 %v472, %v472
  %v475 = vmul.f32 %v474, -0.001358992
  %v476 = vadd.f32 %v475, 0.041655596
  %v477 = vmul.f32 %v474, %v476
  %v478 = vadd.f32 %v477, -0.4999988
  %v479 = vmul.f32 %v474, %v478
  %v480 = vadd.f32 1.0, %v479
  %v481 = vmul.f32 %v472, %v472
  %v482 = vmul.f32 %v481, -0.00019511016
  %v483 = vadd.f32 %v482, 0.008332121
  %v484 = vmul.f32 %v481, %v483
  %v485 = vadd.f32 %v484, -0.16666654
  %v486 = vmul.f32 %v481, %v485
  %v487 = vadd.f32 %v486, 1.0
  %v488 = vmul.f32 %v487, %v472
  %vm489 = vweird.f32 %v29
  %v490 = vand.u32 %v473, 3
  %vm491 = vcmp.lt.s32.totalorder %v490, 2
  %vm492 = vcmp.eq.s32.totalorder %v490, 0
  %v493 = vxor.u32 %v488, 2147483648
  %v494 = vsel %vm492, %v480, %v493
  %vm495 = vcmp.eq.s32.totalorder %v490, 2
  %v496 = vxor.u32 %v480, 2147483648
  %v497 = vsel %vm495, %v496, %v488
  %v498 = vsel %vm491, %v494, %v497
  %v499 = vsel %vm489, nan, %v498
  %v500 = vand.u32 2147483647, %v30
  %vm501 = vcmp.le.f32.partialorder %v500, 0.7853982
  %vm502 = vcmp.lt.s32.totalorder %v30, 0
  %v503 = vand.u32 %v30, 2139095040
  %v504 = vshrl.u32 %v503, 23
  %v505 = vsub.s32 %v504, 127
  %v506 = vand.u32 2147483647, %v30
  %v507 = vand.u32 %v506, 8388607
  %v508 = vor.u32 %v507, 8388608
  %v509 = vsub.s32 0, %v508
  %v510 = vadd.s32 %v505, 1
  %vm511 = vcmp.gt.s32.totalorder %v510, 0
  %v512 = vsel %vm511, %v510, 0
  %v513 = vshrl.u32 %v512, 5
  %v514 = vand.u32 %v512, 31
  %v515 = vsub.s32 32, %v514
  %v516 = vshrl.u32 683565275, %v515
  %v517 = vshll.u32 683565275, %v514
  %v518 = vshrl.u32 2475754826, %v515
  %v519 = vor.u32 %v517, %v518
  %v520 = vshll.u32 2475754826, %v514
  %v521 = vshrl.u32 2131351028, %v515
  %v522 = vor.u32 %v520, %v521
  %v523 = vshll.u32 2131351028, %v514
  %v524 = vshrl.u32 2102212464, %v515
  %v525 = vor.u32 %v523, %v524
  %v526 = vshll.u32 2102212464, %v514
  %v527 = vshrl.u32 920167782, %v515
  %v528 = vor.u32 %v526, %v527
  %v529 = vshll.u32 920167782, %v514
  %v530 = vshrl.u32 1326507024, %v515
  %v531 = vor.u32 %v529, %v530
  %vm532 = vcmp.lt.s32.totalorder %v513, 1
  %vm533 = vcmp.lt.s32.totalorder %v513, 2
  %vm534 = vcmp.lt.s32.totalorder %v513, 3
  %vm535 = vcmp.lt.s32.totalorder %v513, 4
  %v536 = vsel %vm532, %v516, %v519
  %v537 = vsel %vm535, %v525, 2102212464
  %v538 = vsel %vm534, %v522, %v537
  %v539 = vsel %vm533, %v536, %v538
  %v540 = vsel %vm532, %v519, %v522
  %v541 = vsel %vm535, %v528, 920167782
  %v542 = vsel %vm534, %v525, %v541
  %v543 = vsel %vm533, %v540, %v542
  %v544 = vsel %vm532, %v522, %v525
  %v545 = vsel %vm535, %v531, 1326507024
  %v546 = vsel %vm534, %v528, %v545
  %v547 = vsel %vm533, %v544, %v546
  %v548 = vshll.u32 %v508, 8
  %v549 = vand.u32 %v548, 65535
  %v550 = vshrl.u32 %v548, 16
  %v551 = vand.u32 %v547, 65535
  %v552 = vshrl.u32 %v547, 16
  %v553 = vmul.u32 %v549, %v551
  %v554 = vmul.u32 %v549, %v552
  %v555 = vmul.u32 %v550, %v551
  %v556 = vmul.u32 %v550, %v552
  %v557 = vshll.u32 %v554, 16
  %v558 = vshrl.u32 %v554, 16
  %v559 = vshll.u32 %v555, 16
  %v560 = vshrl.u32 %v555, 16
  %vm561 = vc.u32 %v553, %v557
  %v562 = vsel %vm561, 1, 0
  %v563 = vadd.s32 %v553, %v557
  %v564 = vadd.s32 %v556, %v562
  %vm565 = vc.u32 %v563, %v559
  %v566 = vsel %vm565, 1, 0
  %v567 = vadd.s32 %v563, %v559
  %v568 = vadd.s32 %v564, %v566
  %v569 = vadd.s32 %v568, %v558
  %v570 = vadd.s32 %v569, %v560
  %v571 = vand.u32 %v548, 65535
  %v572 = vshrl.u32 %v548, 16
  %v573 = vand.u32 %v543, 65535
  %v574 = vshrl.u32 %v543, 16
  %v575 = vmul.u32 %v571, %v573
  %v576 = vmul.u32 %v571, %v574
  %v577 = vmul.u32 %v572, %v573
  %v578 = vmul.u32 %v572, %v574
  %v579 = vshll.u32 %v576, 16
  %v580 = vshrl.u32 %v576, 16
  %v581 = vshll.u32 %v577, 16
  %v582 = vshrl.u32 %v577, 16
  %vm583 = vc.u32 %v575, %v579
  %v584 = vsel %vm583, 1, 0
  %v585 = vadd.s32 %v575, %v579
  %v586 = vadd.s32 %v578, %v584
  %vm587 = vc.u32 %v585, %v581
  %v588 = vsel %vm587, 1, 0
  %v589 = vadd.s32 %v585, %v581
  %v590 = vadd.s32 %v586, %v588
  %v591 = vadd.s32 %v590, %v580
  %v592 = vadd.s32 %v591, %v582
  %v593 = vmul.u32 %v548, %v539
  %v594 = vadd.s32 %v570, %v589
  %vm595 = vc.u32 %v570, %v589
  %v596 = vadd.s32 %v592, 1
  %v597 = vsel %vm595, %v596, %v592
  %v598 = vadd.s32 %v593, %v597
  %v599 = vadd.s32 %v598, 536870912
  %v600 = vshrl.u32 %v599, 30
  %v601 = vshll.u32 %v600, 30
  %v602 = vsub.s32 %v598, %v601
  %vm603 = vcmp.lt.s32.totalorder %v602, 0
  %v604 = vsub.s32 0, %v602
  %v605 = vsel %vm603, %v604, %v602
  %v606 = vclz %v605
  %v607 = vsub.s32 %v606, 2
  %vm608 = vcmp.gt.s32.totalorder 0, %v607
  %v609 = vsel %vm608, 0, %v607
  %v610 = vsub.s32 32, %v609
  %v611 = vshll.u32 %v602, %v609
  %v612 = vshrl.u32 %v594, %v610
  %v613 = vor.u32 %v611, %v612
  %v614 = vsub.s32 4294967266, %v609
  %v615 = vadd.s32 %v614, 127
  %v616 = vshll.u32 %v615, 23
  %v617 = vor.u32 4788187, %v616
  %v618 = vand.u32 2147483647, %v617
  %v620 = vcvt.s32.f32 %v613
  %v621 = vmul.f32 %v620, %v618
  %v622 = vxor.u32 %v621, 2147483648
  %v623 = vsel %vm502, %v622, %v621
  %v624 = vsub.s32 4, %v600
  %v625 = vsel %vm502, %v624, %v600
  %v626 = vsel %vm501, %v30, %v623
  %v627 = vsel %vm501, 0, %v625
  %v628 = vmul.f32 %v626, %v626
  %v629 = vmul.f32 %v628, -0.001358992
  %v630 = vadd.f32 %v629, 0.041655596
  %v631 = vmul.f32 %v628, %v630
  %v632 = vadd.f32 %v631, -0.4999988
  %v633 = vmul.f32 %v628, %v632
  %v634 = vadd.f32 1.0, %v633
  %v635 = vmul.f32 %v626, %v626
  %v636 = vmul.f32 %v635, -0.00019511016
  %v637 = vadd.f32 %v636, 0.008332121
  %v638 = vmul.f32 %v635, %v637
  %v639 = vadd.f32 %v638, -0.16666654
  %v640 = vmul.f32 %v635, %v639
  %v641 = vadd.f32 %v640, 1.0
  %v642 = vmul.f32 %v641, %v626
  %vm643 = vweird.f32 %v30
  %v644 = vand.u32 %v627, 3
  %vm645 = vcmp.lt.s32.totalorder %v644, 2
  %vm646 = vcmp.eq.s32.totalorder %v644, 0
  %v647 = vxor.u32 %v642, 2147483648
  %v648 = vsel %vm646, %v634, %v647
  %vm649 = vcmp.eq.s32.totalorder %v644, 2
  %v650 = vxor.u32 %v634, 2147483648
  %v651 = vsel %vm649, %v650, %v642
  %v652 = vsel %vm645, %v648, %v651
  %v653 = vsel %vm643, nan, %v652
  %654 = vst.msk [vmem:[%s2 + $0x11] sm:$0xff] %vm343, %v499
  %655 = vst.msk [vmem:[%s2 + $0x19] sm:$0xff] %vm343, %v653
  // Predicated region
  $region10: #{tpu_custom_call.1} parent=0 // pred_check
    _
  $region11: #{tpu_custom_call.1} parent=0 // pred_check_branch
    %657 = sbr.rel (0) target = $region13
  $region12: #{tpu_custom_call.1} parent=0 // pred_region
    _
  $region13: #{tpu_custom_call.1} parent=0 // pred_fallthru
    _
  // Predicated region
  $region14: #{tpu_custom_call.1} parent=0 // pred_check
    _
  $region15: #{tpu_custom_call.1} parent=0 // pred_check_branch
    %659 = sbr.rel (0) target = $region17
  $region16: #{tpu_custom_call.1} parent=0 // pred_region
    _
  $region17: #{tpu_custom_call.1} parent=0 // pred_fallthru
    _

</llo_original>
